<compile_context>
chip_gen: v6e
topology: v6e:2x2x1
jax: 0.10.0
libtpu: 0.0.40
codegen_flags: <defaults>
</compile_context>

<pallas_src>
import functools

import jax
import jax.numpy as jnp
from jax.experimental import pallas as pl
from jax.experimental.pallas import tpu as pltpu


# Conservative resident-weight budget: half of v7x's 64 MiB per-TC VMEM (the
# tightest generation); v5e/v6e have 128 MiB so they clear it automatically.
_WEIGHT_VMEM_BUDGET_BYTES = 32 * 1024 * 1024

if hasattr(pl, "Buffered"):
    # Constant-index weight blocks have nothing to pipeline -> single buffer.
    _WEIGHT_PIPELINE_KW = {"pipeline_mode": pl.Buffered(1)}
else:  # pragma: no cover - older JAX without per-spec buffering control
    _WEIGHT_PIPELINE_KW = {}


def _weight_spec(shape):
    return pl.BlockSpec(shape, lambda i: (0, 0), **_WEIGHT_PIPELINE_KW)


def _pick_tile_b(batch: int) -> int:
    """Batch tile: single step for tiny batches (avoid per-step overhead),
    >= 2 steps once B >= 32 so v7x's two TensorCores both get work.  Tiles are
    multiples of 8 (sublane alignment) capped at 128 (MXU M fill)."""
    if batch < 32:
        return batch
    for t in (128, 64, 32, 16, 8):
        if 2 * t <= batch and batch % t == 0:
            return t
    return batch


def decoder_kernel(x_ref, w1_ref, w2_ref, w3_ref, w4_ref, o_ref):
    # Layer 1: Linear(latent -> hidden), ReLU.  bf16 operands, f32 accumulate.
    h = jnp.dot(x_ref[...], w1_ref[...], preferred_element_type=jnp.float32)
    h = jnp.maximum(h, 0.0)
    # Layer 2: Linear(hidden -> 4*hidden), ReLU.
    h = jnp.dot(h.astype(jnp.bfloat16), w2_ref[...],
                preferred_element_type=jnp.float32)
    h = jnp.maximum(h, 0.0)
    # Layer 3: Linear(4*hidden -> 16*hidden), ReLU.
    h = jnp.dot(h.astype(jnp.bfloat16), w3_ref[...],
                preferred_element_type=jnp.float32)
    h = jnp.maximum(h, 0.0)
    # Layer 4: Linear(16*hidden -> image_size), Sigmoid in f32 (EUP), cast on
    # store to the (bf16) output dtype.
    logits = jnp.dot(h.astype(jnp.bfloat16), w4_ref[...],
                     preferred_element_type=jnp.float32)
    o_ref[...] = jax.nn.sigmoid(logits).astype(o_ref.dtype)


def prepare_decoder_weights(w1, w2, w3, w4):
    """One-time f32 -> bf16 conversion of the (in, out) weight matrices.
    Do this once at model-load time, NOT per forward call."""
    return tuple(w.astype(jnp.bfloat16) for w in (w1, w2, w3, w4))


@functools.partial(jax.jit, static_argnames=("out_dtype",))
def decoder_forward(x, w1, w2, w3, w4, *, out_dtype=jnp.bfloat16):
    B, latent = x.shape
    hidden = w1.shape[1]
    h4 = w2.shape[1]
    h16 = w3.shape[1]
    image_size = w4.shape[1]

    tile_b = _pick_tile_b(B)
    assert B % tile_b == 0

    # bf16 operands: 2x MXU throughput, half the weight DMA bytes.  When the
    # caller passes weights already prepared via prepare_decoder_weights these
    # astypes are identity ops (no extra HBM pass); only x (tiny) is cast here.
    xb = x.astype(jnp.bfloat16)
    w1b = w1.astype(jnp.bfloat16)
    w2b = w2.astype(jnp.bfloat16)
    w3b = w3.astype(jnp.bfloat16)
    w4b = w4.astype(jnp.bfloat16)

    out_itemsize = jnp.dtype(out_dtype).itemsize
    w_bytes = (w1b.size + w2b.size + w3b.size + w4b.size) * 2  # Buffered(1)
    if w_bytes > _WEIGHT_VMEM_BUDGET_BYTES:
        # TODO(synk): K/N-tile layers 3-4 (reduction grid axis last, marked
        # "arbitrary", with an f32 VMEM accumulator) so scaled-up w3/w4 stream
        # through VMEM and overlap with earlier-layer compute instead of
        # staying resident.
        raise NotImplementedError(
            "Resident bf16 weights exceed the per-TensorCore VMEM budget; "
            "layers 3-4 need K/N tiling.")

    # Tight, footprint-derived VMEM limit (weights x 1 buffer, x/out tiles x 2
    # pipeline buffers, f32 intermediates + bf16 copies), with 3x headroom for
    # compiler scratch, capped at v7x's 64 MiB physical per-TC VMEM.
    x_tile_bytes = tile_b * latent * 2 * 2
    o_tile_bytes = tile_b * image_size * out_itemsize * 2
    act_bytes = tile_b * (hidden + h4 + h16 + image_size) * 4
    act_bytes += tile_b * (hidden + h4 + h16) * 2
    vmem_limit = 3 * (w_bytes + x_tile_bytes + o_tile_bytes + act_bytes)
    vmem_limit = min(vmem_limit + (4 << 20), 64 << 20)

    flops = 2 * B * (latent * hidden + hidden * h4 + h4 * h16 + h16 * image_size)
    bytes_accessed = xb.size * 2 + w_bytes + B * image_size * out_itemsize
    cost = pl.CostEstimate(
        flops=flops,
        transcendentals=B * image_size,  # sigmoid exp per output element
        bytes_accessed=bytes_accessed,
    )

    grid = (B // tile_b,)
    return pl.pallas_call(
        decoder_kernel,
        out_shape=jax.ShapeDtypeStruct((B, image_size), out_dtype),
        grid_spec=pltpu.PrefetchScalarGridSpec(
            num_scalar_prefetch=0,
            grid=grid,
            in_specs=[
                pl.BlockSpec((tile_b, latent), lambda i: (i, 0)),
                _weight_spec(w1b.shape),
                _weight_spec(w2b.shape),
                _weight_spec(w3b.shape),
                _weight_spec(w4b.shape),
            ],
            out_specs=pl.BlockSpec((tile_b, image_size), lambda i: (i, 0)),
        ),
        compiler_params=pltpu.CompilerParams(
            dimension_semantics=("parallel",),
            vmem_limit_bytes=int(vmem_limit),
        ),
        cost_estimate=cost,
    )(xb, w1b, w2b, w3b, w4b)


def init_linear_weight(key, in_features, out_features):
    # Deterministic init mimicking nn.Linear default (kaiming-uniform-ish),
    # stored already transposed: shape (in, out).
    bound = 1.0 / jnp.sqrt(jnp.float32(in_features))
    return jax.random.uniform(
        key, (in_features, out_features), dtype=jnp.float32,
        minval=-bound, maxval=bound,
    )


def reference_forward_mixed(x, w1b, w2b, w3b, w4b):
    # Mirrors the kernel's mixed-precision recipe (bf16 operands, f32 accum,
    # f32 sigmoid) for a tight self-consistency check.
    xb = x.astype(jnp.bfloat16)
    h = jnp.maximum(jnp.dot(xb, w1b, preferred_element_type=jnp.float32), 0.0)
    h = jnp.maximum(
        jnp.dot(h.astype(jnp.bfloat16), w2b, preferred_element_type=jnp.float32), 0.0)
    h = jnp.maximum(
        jnp.dot(h.astype(jnp.bfloat16), w3b, preferred_element_type=jnp.float32), 0.0)
    logits = jnp.dot(h.astype(jnp.bfloat16), w4b, preferred_element_type=jnp.float32)
    return jax.nn.sigmoid(logits)


def reference_forward_f32(x, w1, w2, w3, w4):
    # Full-f32 reference matching the original PyTorch Decoder semantics
    # (bias-free Linear -> ReLU x3 -> Linear -> Sigmoid).
    h = jnp.maximum(x @ w1, 0.0)
    h = jnp.maximum(h @ w2, 0.0)
    h = jnp.maximum(h @ w3, 0.0)
    return jax.nn.sigmoid(h @ w4)


if __name__ == "__main__":
    # Small shapes consistent with the module:
    #   latent_size=32, hidden_size=32 -> 4*hidden=128, 16*hidden=512,
    #   image_size=256, batch=16
    B = 16
    latent_size = 32
    hidden_size = 32
    image_size = 256

    key = jax.random.PRNGKey(0)
    kx, k1, k2, k3, k4 = jax.random.split(key, 5)

    x = jax.random.normal(kx, (B, latent_size), dtype=jnp.float32)
    w1 = init_linear_weight(k1, latent_size, hidden_size)
    w2 = init_linear_weight(k2, hidden_size, 4 * hidden_size)
    w3 = init_linear_weight(k3, 4 * hidden_size, 16 * hidden_size)
    w4 = init_linear_weight(k4, 16 * hidden_size, image_size)

    # One-time bf16 conversion (model-load time), not per forward call.
    params = prepare_decoder_weights(w1, w2, w3, w4)

    out = decoder_forward(x, *params)
    out = jax.block_until_ready(out)

    assert out.shape == (B, image_size)
    assert out.dtype == jnp.bfloat16
    out_f32 = out.astype(jnp.float32)
    assert bool(jnp.all(jnp.isfinite(out_f32)))

    # Tight check against the same mixed-precision recipe.
    ref_mixed = reference_forward_mixed(x, *params)
    assert jnp.allclose(out_f32, ref_mixed, atol=1e-2, rtol=1e-2)

    # Loose check against the true f32 PyTorch-equivalent forward (bf16
    # operands + bf16 output rounding; sigmoid bounds the drift).
    ref_f32 = reference_forward_f32(x, w1, w2, w3, w4)
    assert jnp.allclose(out_f32, ref_f32, atol=5e-2, rtol=5e-2)

    print("KERNEL_OK")
</pallas_src>

<mosaic_0001>
module attributes {stable_mosaic.version = 11 : i64} {
  func.func @decoder_kernel(%arg0: i32, %arg1: memref<16x32xbf16, #tpu.memory_space<vmem>>, %arg2: memref<32x32xbf16, #tpu.memory_space<vmem>>, %arg3: memref<32x128xbf16, #tpu.memory_space<vmem>>, %arg4: memref<128x512xbf16, #tpu.memory_space<vmem>>, %arg5: memref<512x256xbf16, #tpu.memory_space<vmem>>, %arg6: memref<16x256xbf16, #tpu.memory_space<vmem>>) attributes {dimension_semantics = [#tpu.dimension_semantics<parallel>], iteration_bounds = array<i64: 1>, scalar_prefetch = 0 : i64, scratch_operands = 0 : i64, tpu.core_type = #tpu.core_type<tc>, window_params = [{transform_indices = @transform_0, window_bounds = array<i64: 16, 32>}, {pipeline_mode = #tpu.pipeline_mode<synchronous>, transform_indices = @transform_1, window_bounds = array<i64: 32, 32>}, {pipeline_mode = #tpu.pipeline_mode<synchronous>, transform_indices = @transform_2, window_bounds = array<i64: 32, 128>}, {pipeline_mode = #tpu.pipeline_mode<synchronous>, transform_indices = @transform_3, window_bounds = array<i64: 128, 512>}, {pipeline_mode = #tpu.pipeline_mode<synchronous>, transform_indices = @transform_4, window_bounds = array<i64: 512, 256>}, {transform_indices = @transform_5, window_bounds = array<i64: 16, 256>}]} {
    %c0 = arith.constant 0 : index
    %c0_0 = arith.constant 0 : index
    %0 = vector.load %arg1[%c0, %c0_0] : memref<16x32xbf16, #tpu.memory_space<vmem>>, vector<16x32xbf16>
    %c0_1 = arith.constant 0 : index
    %c0_2 = arith.constant 0 : index
    %1 = vector.load %arg2[%c0_1, %c0_2] : memref<32x32xbf16, #tpu.memory_space<vmem>>, vector<32x32xbf16>
    %cst = arith.constant dense<0.000000e+00> : vector<16x32xf32>
    %2 = tpu.matmul %0, %1, %cst {dimension_numbers = #tpu.dot_dimension_numbers<[1], [0], [0], [1], [0, 0, 1, 1], [], []>} : vector<16x32xbf16>, vector<32x32xbf16>, vector<16x32xf32> -> vector<16x32xf32>
    %cst_3 = arith.constant 0.000000e+00 : f32
    %3 = vector.broadcast %cst_3 : f32 to vector<16x32xf32>
    %4 = arith.maximumf %2, %3 : vector<16x32xf32>
    %5 = arith.truncf %4 : vector<16x32xf32> to vector<16x32xbf16>
    %c0_4 = arith.constant 0 : index
    %c0_5 = arith.constant 0 : index
    %6 = vector.load %arg3[%c0_4, %c0_5] : memref<32x128xbf16, #tpu.memory_space<vmem>>, vector<32x128xbf16>
    %cst_6 = arith.constant dense<0.000000e+00> : vector<16x128xf32>
    %7 = tpu.matmul %5, %6, %cst_6 {dimension_numbers = #tpu.dot_dimension_numbers<[1], [0], [0], [1], [0, 0, 1, 1], [], []>} : vector<16x32xbf16>, vector<32x128xbf16>, vector<16x128xf32> -> vector<16x128xf32>
    %cst_7 = arith.constant 0.000000e+00 : f32
    %8 = vector.broadcast %cst_7 : f32 to vector<16x128xf32>
    %9 = arith.maximumf %7, %8 : vector<16x128xf32>
    %10 = arith.truncf %9 : vector<16x128xf32> to vector<16x128xbf16>
    %c0_8 = arith.constant 0 : index
    %c0_9 = arith.constant 0 : index
    %11 = vector.load %arg4[%c0_8, %c0_9] : memref<128x512xbf16, #tpu.memory_space<vmem>>, vector<128x512xbf16>
    %cst_10 = arith.constant dense<0.000000e+00> : vector<16x512xf32>
    %12 = tpu.matmul %10, %11, %cst_10 {dimension_numbers = #tpu.dot_dimension_numbers<[1], [0], [0], [1], [0, 0, 1, 1], [], []>} : vector<16x128xbf16>, vector<128x512xbf16>, vector<16x512xf32> -> vector<16x512xf32>
    %cst_11 = arith.constant 0.000000e+00 : f32
    %13 = vector.broadcast %cst_11 : f32 to vector<16x512xf32>
    %14 = arith.maximumf %12, %13 : vector<16x512xf32>
    %15 = arith.truncf %14 : vector<16x512xf32> to vector<16x512xbf16>
    %c0_12 = arith.constant 0 : index
    %c0_13 = arith.constant 0 : index
    %16 = vector.load %arg5[%c0_12, %c0_13] : memref<512x256xbf16, #tpu.memory_space<vmem>>, vector<512x256xbf16>
    %cst_14 = arith.constant dense<0.000000e+00> : vector<16x256xf32>
    %17 = tpu.matmul %15, %16, %cst_14 {dimension_numbers = #tpu.dot_dimension_numbers<[1], [0], [0], [1], [0, 0, 1, 1], [], []>} : vector<16x512xbf16>, vector<512x256xbf16>, vector<16x256xf32> -> vector<16x256xf32>
    %18 = arith.negf %17 : vector<16x256xf32>
    %19 = math.exp %18 : vector<16x256xf32>
    %cst_15 = arith.constant 1.000000e+00 : f32
    %20 = vector.broadcast %cst_15 : f32 to vector<16x256xf32>
    %21 = arith.addf %20, %19 : vector<16x256xf32>
    %22 = arith.divf %20, %21 : vector<16x256xf32>
    %23 = arith.truncf %22 : vector<16x256xf32> to vector<16x256xbf16>
    %c0_16 = arith.constant 0 : index
    %c0_17 = arith.constant 0 : index
    %24 = vector.load %arg6[%c0_16, %c0_17] : memref<16x256xbf16, #tpu.memory_space<vmem>>, vector<16x256xbf16>
    tpu.vector_store %arg6[%c0_16, %c0_17], %23 {strides = array<i32>} : memref<16x256xbf16, #tpu.memory_space<vmem>>, vector<16x256xbf16>,
    return
  }
  func.func @transform_0(%arg0: i32) -> (i32, i32) {
    %c0_i32 = arith.constant 0 : i32
    %c0_i32_0 = arith.constant 0 : i32
    return %arg0, %c0_i32 : i32, i32
  }
  func.func @transform_1(%arg0: i32) -> (i32, i32) {
    %c0_i32 = arith.constant 0 : i32
    %c0_i32_0 = arith.constant 0 : i32
    %c0_i32_1 = arith.constant 0 : i32
    return %c0_i32, %c0_i32_0 : i32, i32
  }
  func.func @transform_2(%arg0: i32) -> (i32, i32) {
    %c0_i32 = arith.constant 0 : i32
    %c0_i32_0 = arith.constant 0 : i32
    %c0_i32_1 = arith.constant 0 : i32
    return %c0_i32, %c0_i32_0 : i32, i32
  }
  func.func @transform_3(%arg0: i32) -> (i32, i32) {
    %c0_i32 = arith.constant 0 : i32
    %c0_i32_0 = arith.constant 0 : i32
    %c0_i32_1 = arith.constant 0 : i32
    return %c0_i32, %c0_i32_0 : i32, i32
  }
  func.func @transform_4(%arg0: i32) -> (i32, i32) {
    %c0_i32 = arith.constant 0 : i32
    %c0_i32_0 = arith.constant 0 : i32
    %c0_i32_1 = arith.constant 0 : i32
    return %c0_i32, %c0_i32_0 : i32, i32
  }
  func.func @transform_5(%arg0: i32) -> (i32, i32) {
    %c0_i32 = arith.constant 0 : i32
    %c0_i32_0 = arith.constant 0 : i32
    return %arg0, %c0_i32 : i32, i32
  }
}

</mosaic_0001>

<llo_original>
// kernel: decoder_forward.1
$region0: #{decoder_forward.1}
  #allocation0 [shape = 'u32[]', space=smem, size = 0x4, offset = 0x4, fixed_abs, tag = 'smem constant byte address 0x4 - core index']
  #allocation1 [shape = 'u32[144,128]{1,0:T(1,128)}', space=vmem, size = 0x12000, scoped, tag = 'internal scratch']
  %s0 = inlined_call_operand.vmem [shape: bf16[16,32], index: 0, kind: input, shape index: {}]
  %s1 = inlined_call_operand.vmem [shape: bf16[32,32], index: 1, kind: input, shape index: {}]
  %s2 = inlined_call_operand.hbm [shape: bf16[32,128], index: 2, kind: input, shape index: {}]
  %s3 = inlined_call_operand.hbm [shape: bf16[128,512], index: 3, kind: input, shape index: {}]
  %s4 = inlined_call_operand.hbm [shape: bf16[512,256], index: 4, kind: input, shape index: {}]
  %s5 = inlined_call_operand.hbm [shape: bf16[16,256], index: 5, kind: output, shape index: {}]
  %s6 = sld [smem:[#allocation0]]
  $region42: #{decoder_forward.1} parent=0
    _
  %s8 = ssub.s32 1, %s6
  %s9 = scalar_select 0, %s8, %s6
  $region1: #{decoder_forward.1} parent=0
    #allocation2 [shape = 'u8[8192]{0}', space=vmem, size = 0x2000, scoped, tag = 'input window, operand 2, single buffered']
    #allocation3 [shape = 's32[1]{0}', space=sflag, size = 0x4, scoped, tag = 'scoped memory for decoder_forward.1']
    #allocation4 [shape = 's32[1]{0}', space=sflag, size = 0x4, scoped, tag = 'scoped memory for decoder_forward.1']
    #allocation5 [shape = 'u8[131072]{0}', space=vmem, size = 0x20000, scoped, tag = 'input window, operand 3, single buffered']
    #allocation6 [shape = 's32[1]{0}', space=sflag, size = 0x4, scoped, tag = 'scoped memory for decoder_forward.1']
    #allocation7 [shape = 'u8[262144]{0}', space=vmem, size = 0x40000, scoped, tag = 'input window, operand 4, single buffered']
    #allocation8 [shape = 'u8[8192]{0}', space=vmem, size = 0x2000, scoped, tag = 'output window, operand 0, single buffered']
    %10 = vsyncpa [#allocation3], 0
    %11 = vsyncpa [#allocation6], 0
    %12 = vsyncpa [#allocation4], 0
    // Predicated region
    $region2: #{decoder_forward.1} parent=1 // pred_check
      _
    $region3: #{decoder_forward.1} parent=1 // pred_check_branch
      %14 = sbr.rel (0) target = $region5
    $region4: #{decoder_forward.1} parent=1 // pred_region
      _
    $region5: #{decoder_forward.1} parent=1 // pred_fallthru
      _
    // Predicated region
    $region6: #{decoder_forward.1} parent=1 // pred_check
      _
    $region7: #{decoder_forward.1} parent=1 // pred_check_branch
      %16 = sbr.rel (0) target = $region9
    $region8: #{decoder_forward.1} parent=1 // pred_region
      _
    $region9: #{decoder_forward.1} parent=1 // pred_fallthru
      _
    // Predicated region
    $region10: #{decoder_forward.1} parent=1 // pred_check
      _
    $region11: #{decoder_forward.1} parent=1 // pred_check_branch
      %18 = sbr.rel (0) target = $region13
    $region12: #{decoder_forward.1} parent=1 // pred_region
      %s20 = ssub.s32 256, 256
      %21 = vsyncadd [#allocation3], %s20
      %s22 = sshll.u32 [#allocation2], 4
      %s23 = int_to_ptr.vmem [resolvable:$true] %s22
      %28 = dma.hbm_to_vmem [thread:$0]  %s2, 256, %s23, [#allocation3], 64, 64, 4
    $region13: #{decoder_forward.1} parent=1 // pred_fallthru
      _
    // Predicated region
    $region14: #{decoder_forward.1} parent=1 // pred_check
      _
    $region15: #{decoder_forward.1} parent=1 // pred_check_branch
      %30 = sbr.rel (0) target = $region17
    $region16: #{decoder_forward.1} parent=1 // pred_region
      %s32 = ssub.s32 4096, 4096
      %33 = vsyncadd [#allocation6], %s32
      %s34 = sshll.u32 [#allocation5], 4
      %s35 = int_to_ptr.vmem [resolvable:$true] %s34
      %40 = dma.hbm_to_vmem [thread:$0]  %s3, 4096, %s35, [#allocation6], 256, 256, 16
    $region17: #{decoder_forward.1} parent=1 // pred_fallthru
      _
    // Predicated region
    $region18: #{decoder_forward.1} parent=1 // pred_check
      _
    $region19: #{decoder_forward.1} parent=1 // pred_check_branch
      %42 = sbr.rel (0) target = $region21
    $region20: #{decoder_forward.1} parent=1 // pred_region
      %s44 = ssub.s32 8192, 8192
      %45 = vsyncadd [#allocation6], %s44
      %s46 = sshll.u32 [#allocation7], 4
      %s47 = int_to_ptr.vmem [resolvable:$true] %s46
      %52 = dma.hbm_to_vmem [thread:$0]  %s4, 8192, %s47, [#allocation6], 128, 128, 8
    $region21: #{decoder_forward.1} parent=1 // pred_fallthru
      _
    // Predicated region
    $region22: #{decoder_forward.1} parent=1 // pred_check
      _
    $region23: #{decoder_forward.1} parent=1 // pred_check_branch
      %54 = sbr.rel (0) target = $region25
    $region24: #{decoder_forward.1} parent=1 // pred_region
      %55 = dma.done [#allocation3], 256
    $region25: #{decoder_forward.1} parent=1 // pred_fallthru
      _
    // Predicated region
    $region26: #{decoder_forward.1} parent=1 // pred_check
      _
    $region27: #{decoder_forward.1} parent=1 // pred_check_branch
      %57 = sbr.rel (0) target = $region29
    $region28: #{decoder_forward.1} parent=1 // pred_region
      %58 = dma.done [#allocation6], 4096
    $region29: #{decoder_forward.1} parent=1 // pred_fallthru
      _
    // Predicated region
    $region30: #{decoder_forward.1} parent=1 // pred_check
      _
    $region31: #{decoder_forward.1} parent=1 // pred_check_branch
      %60 = sbr.rel (0) target = $region33
    $region32: #{decoder_forward.1} parent=1 // pred_region
      %61 = dma.done [#allocation6], 8192
    $region33: #{decoder_forward.1} parent=1 // pred_fallthru
      _
    %v63 = vld [vmem:[%s0] sm:$0xf]
    %v64 = vld [vmem:[%s0 + $0x4] sm:$0xf]
    %v65 = vld [vmem:[%s1] sm:$0xf]
    %v66 = vld [vmem:[%s1 + $0x4] sm:$0xf]
    %v67 = vld [vmem:[%s1 + $0x8] sm:$0xf]
    %v68 = vld [vmem:[%s1 + $0xc] sm:$0xf]
    %v71 = vunpack.c.l.b16 %v63
    %v72 = vunpack.c.l.b16 %v64
    %v73 = vpack.c.b16 %v72, %v71
    %v78 = vunpack.c.l.b16 %v65
    %v79 = vunpack.c.l.b16 %v66
    %v80 = vunpack.c.l.b16 %v67
    %v81 = vunpack.c.l.b16 %v68
    %v82 = vpack.c.b16 %v79, %v78
    %v83 = vpack.c.b16 %v81, %v80
    %vm86 = vcmask 261120
    %v88 = vsel %vm86, %v73, 0
    %90 = vmatprep.subr.bf16.mxu0 0
    %91 = vmatpush1.bf16.msra.mxu0 0
    %92 = vmatprep.subr.bf16.mxu0 0
    %93 = vmatpush1.bf16.msra.mxu0 0
    %94 = vmatprep.subr.bf16.mxu0 0
    %95 = vmatpush1.bf16.msra.mxu0 0
    %96 = vmatprep.subr.bf16.mxu0 0
    %97 = vmatpush1.bf16.msra.mxu0 0
    %98 = vmatprep.subr.bf16.mxu0 0
    %99 = vmatpush1.bf16.msra.mxu0 0
    %100 = vmatprep.subr.bf16.mxu0 0
    %101 = vmatpush1.bf16.msra.mxu0 0
    %102 = vmatprep.subr.bf16.mxu0 0
    %103 = vmatpush1.bf16.msra.mxu0 %v83
    %104 = vmatprep.subr.bf16.mxu0 0
    %105 = vmatpush1.bf16.msra.mxu0 %v82
    %106 = vmatprep.subr.bf16.mxu0 0
    %107 = vmatpush2.bf16.msra.mxu0 0
    %108 = vmatprep.subr.bf16.mxu0 0
    %109 = vmatpush2.bf16.msra.mxu0 0
    %110 = vmatprep.subr.bf16.mxu0 0
    %111 = vmatpush2.bf16.msra.mxu0 0
    %112 = vmatprep.subr.bf16.mxu0 0
    %113 = vmatpush2.bf16.msra.mxu0 0
    %114 = vmatprep.subr.bf16.mxu0 0
    %115 = vmatpush2.bf16.msra.mxu0 0
    %116 = vmatprep.subr.bf16.mxu0 0
    %117 = vmatpush2.bf16.msra.mxu0 0
    %118 = vmatprep.subr.bf16.mxu0 0
    %119 = vmatpush2.bf16.msra.mxu0 0
    %120 = vmatprep.subr.bf16.mxu0 0
    %121 = vmatpush2.bf16.msra.mxu0 0
    %122 = vmatprep.mubr.bf16.mxu0 0
    %123 = vmatmul.mubr.bf16.gmra.mxu0 %v88
    %v124 = vpop.f32.mrf.mxu0
    %v125 = vadd.f32 0.0, %v124
    %v126 = vpop.f32.mrf.mxu0
    %v127 = vpop.f32.mrf.mxu0
    %v128 = vadd.f32 0.0, %v127
    %v129 = vpop.f32.mrf.mxu0
    %130 = vdwg.mxu0
    %v131 = vmax.f32 %v125, 0.0
    %v132 = vmax.f32 %v128, 0.0
    %v133 = vpack.c.bf16 %v132, %v131
    %v134 = vld [vmem:[#allocation2] sm:$0xf]
    %v135 = vld [vmem:[#allocation2 + $0x4] sm:$0xf]
    %v136 = vld [vmem:[#allocation2 + $0x8] sm:$0xf]
    %v137 = vld [vmem:[#allocation2 + $0xc] sm:$0xf]
    %v142 = vunpack.c.l.b16 %v134
    %v143 = vunpack.c.l.b16 %v135
    %v144 = vunpack.c.l.b16 %v136
    %v145 = vunpack.c.l.b16 %v137
    %v146 = vpack.c.b16 %v143, %v142
    %v147 = vpack.c.b16 %v145, %v144
    %v151 = vsel %vm86, %v133, 0
    %153 = vmatprep.subr.bf16.mxu0 0
    %154 = vmatpush1.bf16.msra.mxu0 0
    %155 = vmatprep.subr.bf16.mxu0 0
    %156 = vmatpush1.bf16.msra.mxu0 0
    %157 = vmatprep.subr.bf16.mxu0 0
    %158 = vmatpush1.bf16.msra.mxu0 0
    %159 = vmatprep.subr.bf16.mxu0 0
    %160 = vmatpush1.bf16.msra.mxu0 0
    %161 = vmatprep.subr.bf16.mxu0 0
    %162 = vmatpush1.bf16.msra.mxu0 0
    %163 = vmatprep.subr.bf16.mxu0 0
    %164 = vmatpush1.bf16.msra.mxu0 0
    %165 = vmatprep.subr.bf16.mxu0 0
    %166 = vmatpush1.bf16.msra.mxu0 %v147
    %167 = vmatprep.subr.bf16.mxu0 0
    %168 = vmatpush1.bf16.msra.mxu0 %v146
    %169 = vmatprep.subr.bf16.mxu0 0
    %170 = vmatpush2.bf16.msra.mxu0 0
    %171 = vmatprep.subr.bf16.mxu0 0
    %172 = vmatpush2.bf16.msra.mxu0 0
    %173 = vmatprep.subr.bf16.mxu0 0
    %174 = vmatpush2.bf16.msra.mxu0 0
    %175 = vmatprep.subr.bf16.mxu0 0
    %176 = vmatpush2.bf16.msra.mxu0 0
    %177 = vmatprep.subr.bf16.mxu0 0
    %178 = vmatpush2.bf16.msra.mxu0 0
    %179 = vmatprep.subr.bf16.mxu0 0
    %180 = vmatpush2.bf16.msra.mxu0 0
    %181 = vmatprep.subr.bf16.mxu0 0
    %182 = vmatpush2.bf16.msra.mxu0 0
    %183 = vmatprep.subr.bf16.mxu0 0
    %184 = vmatpush2.bf16.msra.mxu0 0
    %185 = vmatprep.mubr.bf16.mxu0 0
    %186 = vmatmul.mubr.bf16.gmra.mxu0 %v151
    %v187 = vpop.f32.mrf.mxu0
    %v188 = vadd.f32 0.0, %v187
    %v189 = vpop.f32.mrf.mxu0
    %v190 = vpop.f32.mrf.mxu0
    %v191 = vadd.f32 0.0, %v190
    %v192 = vpop.f32.mrf.mxu0
    %193 = vdwg.mxu0
    %v194 = vmax.f32 %v188, 0.0
    %v195 = vmax.f32 %v191, 0.0
    %v196 = vpack.c.bf16 %v195, %v194
    %v197 = vld [vmem:[#allocation5] sm:$0xff]
    %v198 = vld [vmem:[#allocation5 + $0x8] sm:$0xff]
    %v199 = vld [vmem:[#allocation5 + $0x10] sm:$0xff]
    %v200 = vld [vmem:[#allocation5 + $0x18] sm:$0xff]
    %v201 = vld [vmem:[#allocation5 + $0x20] sm:$0xff]
    %v202 = vld [vmem:[#allocation5 + $0x28] sm:$0xff]
    %v203 = vld [vmem:[#allocation5 + $0x30] sm:$0xff]
    %v204 = vld [vmem:[#allocation5 + $0x38] sm:$0xff]
    %v205 = vld [vmem:[#allocation5 + $0x40] sm:$0xff]
    %v206 = vld [vmem:[#allocation5 + $0x48] sm:$0xff]
    %v207 = vld [vmem:[#allocation5 + $0x50] sm:$0xff]
    %v208 = vld [vmem:[#allocation5 + $0x58] sm:$0xff]
    %v209 = vld [vmem:[#allocation5 + $0x60] sm:$0xff]
    %v210 = vld [vmem:[#allocation5 + $0x68] sm:$0xff]
    %v211 = vld [vmem:[#allocation5 + $0x70] sm:$0xff]
    %v212 = vld [vmem:[#allocation5 + $0x78] sm:$0xff]
    %v213 = vld [vmem:[#allocation5 + $0x80] sm:$0xff]
    %v214 = vld [vmem:[#allocation5 + $0x88] sm:$0xff]
    %v215 = vld [vmem:[#allocation5 + $0x90] sm:$0xff]
    %v216 = vld [vmem:[#allocation5 + $0x98] sm:$0xff]
    %v217 = vld [vmem:[#allocation5 + $0xa0] sm:$0xff]
    %v218 = vld [vmem:[#allocation5 + $0xa8] sm:$0xff]
    %v219 = vld [vmem:[#allocation5 + $0xb0] sm:$0xff]
    %v220 = vld [vmem:[#allocation5 + $0xb8] sm:$0xff]
    %v221 = vld [vmem:[#allocation5 + $0xc0] sm:$0xff]
    %v222 = vld [vmem:[#allocation5 + $0xc8] sm:$0xff]
    %v223 = vld [vmem:[#allocation5 + $0xd0] sm:$0xff]
    %v224 = vld [vmem:[#allocation5 + $0xd8] sm:$0xff]
    %v225 = vld [vmem:[#allocation5 + $0xe0] sm:$0xff]
    %v226 = vld [vmem:[#allocation5 + $0xe8] sm:$0xff]
    %v227 = vld [vmem:[#allocation5 + $0xf0] sm:$0xff]
    %v228 = vld [vmem:[#allocation5 + $0xf8] sm:$0xff]
    %v261 = vunpack.c.l.b16 %v197
    %v262 = vunpack.c.h.b16 %v197
    %v263 = vunpack.c.l.b16 %v198
    %v264 = vunpack.c.h.b16 %v198
    %v265 = vunpack.c.l.b16 %v199
    %v266 = vunpack.c.h.b16 %v199
    %v267 = vunpack.c.l.b16 %v200
    %v268 = vunpack.c.h.b16 %v200
    %v269 = vunpack.c.l.b16 %v201
    %v270 = vunpack.c.h.b16 %v201
    %v271 = vunpack.c.l.b16 %v202
    %v272 = vunpack.c.h.b16 %v202
    %v273 = vunpack.c.l.b16 %v203
    %v274 = vunpack.c.h.b16 %v203
    %v275 = vunpack.c.l.b16 %v204
    %v276 = vunpack.c.h.b16 %v204
    %v277 = vunpack.c.l.b16 %v205
    %v278 = vunpack.c.h.b16 %v205
    %v279 = vunpack.c.l.b16 %v206
    %v280 = vunpack.c.h.b16 %v206
    %v281 = vunpack.c.l.b16 %v207
    %v282 = vunpack.c.h.b16 %v207
    %v283 = vunpack.c.l.b16 %v208
    %v284 = vunpack.c.h.b16 %v208
    %v285 = vunpack.c.l.b16 %v209
    %v286 = vunpack.c.h.b16 %v209
    %v287 = vunpack.c.l.b16 %v210
    %v288 = vunpack.c.h.b16 %v210
    %v289 = vunpack.c.l.b16 %v211
    %v290 = vunpack.c.h.b16 %v211
    %v291 = vunpack.c.l.b16 %v212
    %v292 = vunpack.c.h.b16 %v212
    %v293 = vunpack.c.l.b16 %v213
    %v294 = vunpack.c.h.b16 %v213
    %v295 = vunpack.c.l.b16 %v214
    %v296 = vunpack.c.h.b16 %v214
    %v297 = vunpack.c.l.b16 %v215
    %v298 = vunpack.c.h.b16 %v215
    %v299 = vunpack.c.l.b16 %v216
    %v300 = vunpack.c.h.b16 %v216
    %v301 = vunpack.c.l.b16 %v217
    %v302 = vunpack.c.h.b16 %v217
    %v303 = vunpack.c.l.b16 %v218
    %v304 = vunpack.c.h.b16 %v218
    %v305 = vunpack.c.l.b16 %v219
    %v306 = vunpack.c.h.b16 %v219
    %v307 = vunpack.c.l.b16 %v220
    %v308 = vunpack.c.h.b16 %v220
    %v309 = vunpack.c.l.b16 %v221
    %v310 = vunpack.c.h.b16 %v221
    %v311 = vunpack.c.l.b16 %v222
    %v312 = vunpack.c.h.b16 %v222
    %v313 = vunpack.c.l.b16 %v223
    %v314 = vunpack.c.h.b16 %v223
    %v315 = vunpack.c.l.b16 %v224
    %v316 = vunpack.c.h.b16 %v224
    %v317 = vunpack.c.l.b16 %v225
    %v318 = vunpack.c.h.b16 %v225
    %v319 = vunpack.c.l.b16 %v226
    %v320 = vunpack.c.h.b16 %v226
    %v321 = vunpack.c.l.b16 %v227
    %v322 = vunpack.c.h.b16 %v227
    %v323 = vunpack.c.l.b16 %v228
    %v324 = vunpack.c.h.b16 %v228
    %v325 = vpack.c.b16 %v265, %v261
    %v326 = vpack.c.b16 %v266, %v262
    %v327 = vpack.c.b16 %v267, %v263
    %v328 = vpack.c.b16 %v268, %v264
    %v329 = vpack.c.b16 %v273, %v269
    %v330 = vpack.c.b16 %v274, %v270
    %v331 = vpack.c.b16 %v275, %v271
    %v332 = vpack.c.b16 %v276, %v272
    %v333 = vpack.c.b16 %v281, %v277
    %v334 = vpack.c.b16 %v282, %v278
    %v335 = vpack.c.b16 %v283, %v279
    %v336 = vpack.c.b16 %v284, %v280
    %v337 = vpack.c.b16 %v289, %v285
    %v338 = vpack.c.b16 %v290, %v286
    %v339 = vpack.c.b16 %v291, %v287
    %v340 = vpack.c.b16 %v292, %v288
    %v341 = vpack.c.b16 %v297, %v293
    %v342 = vpack.c.b16 %v298, %v294
    %v343 = vpack.c.b16 %v299, %v295
    %v344 = vpack.c.b16 %v300, %v296
    %v345 = vpack.c.b16 %v305, %v301
    %v346 = vpack.c.b16 %v306, %v302
    %v347 = vpack.c.b16 %v307, %v303
    %v348 = vpack.c.b16 %v308, %v304
    %v349 = vpack.c.b16 %v313, %v309
    %v350 = vpack.c.b16 %v314, %v310
    %v351 = vpack.c.b16 %v315, %v311
    %v352 = vpack.c.b16 %v316, %v312
    %v353 = vpack.c.b16 %v321, %v317
    %v354 = vpack.c.b16 %v322, %v318
    %v355 = vpack.c.b16 %v323, %v319
    %v356 = vpack.c.b16 %v324, %v320
    %389 = vmatprep.subr.bf16.mxu0 %v354
    %390 = vmatpush1.bf16.msra.mxu0 %v353
    %391 = vmatprep.subr.bf16.mxu0 %v350
    %392 = vmatpush1.bf16.msra.mxu0 %v349
    %393 = vmatprep.subr.bf16.mxu0 %v346
    %394 = vmatpush1.bf16.msra.mxu0 %v345
    %395 = vmatprep.subr.bf16.mxu0 %v342
    %396 = vmatpush1.bf16.msra.mxu0 %v341
    %397 = vmatprep.subr.bf16.mxu0 %v338
    %398 = vmatpush1.bf16.msra.mxu0 %v337
    %399 = vmatprep.subr.bf16.mxu0 %v334
    %400 = vmatpush1.bf16.msra.mxu0 %v333
    %401 = vmatprep.subr.bf16.mxu0 %v330
    %402 = vmatpush1.bf16.msra.mxu0 %v329
    %403 = vmatprep.subr.bf16.mxu0 %v326
    %404 = vmatpush1.bf16.msra.mxu0 %v325
    %405 = vmatprep.subr.bf16.mxu0 0
    %406 = vmatpush2.bf16.msra.mxu0 0
    %407 = vmatprep.subr.bf16.mxu0 0
    %408 = vmatpush2.bf16.msra.mxu0 0
    %409 = vmatprep.subr.bf16.mxu0 0
    %410 = vmatpush2.bf16.msra.mxu0 0
    %411 = vmatprep.subr.bf16.mxu0 0
    %412 = vmatpush2.bf16.msra.mxu0 0
    %413 = vmatprep.subr.bf16.mxu0 0
    %414 = vmatpush2.bf16.msra.mxu0 0
    %415 = vmatprep.subr.bf16.mxu0 0
    %416 = vmatpush2.bf16.msra.mxu0 0
    %417 = vmatprep.subr.bf16.mxu0 0
    %418 = vmatpush2.bf16.msra.mxu0 0
    %419 = vmatprep.subr.bf16.mxu0 0
    %420 = vmatpush2.bf16.msra.mxu0 0
    %421 = vmatprep.mubr.bf16.mxu0 0
    %422 = vmatmul.mubr.bf16.gmra.mxu0 %v196
    %v423 = vpop.f32.mrf.mxu0
    %v424 = vadd.f32 0.0, %v423
    %v425 = vpop.f32.mrf.mxu0
    %v426 = vadd.f32 0.0, %v425
    %v427 = vpop.f32.mrf.mxu0
    %v428 = vadd.f32 0.0, %v427
    %v429 = vpop.f32.mrf.mxu0
    %v430 = vadd.f32 0.0, %v429
    %431 = vdwg.mxu0
    %432 = vmatprep.subr.bf16.mxu0 %v356
    %433 = vmatpush1.bf16.msra.mxu0 %v355
    %434 = vmatprep.subr.bf16.mxu0 %v352
    %435 = vmatpush1.bf16.msra.mxu0 %v351
    %436 = vmatprep.subr.bf16.mxu0 %v348
    %437 = vmatpush1.bf16.msra.mxu0 %v347
    %438 = vmatprep.subr.bf16.mxu0 %v344
    %439 = vmatpush1.bf16.msra.mxu0 %v343
    %440 = vmatprep.subr.bf16.mxu0 %v340
    %441 = vmatpush1.bf16.msra.mxu0 %v339
    %442 = vmatprep.subr.bf16.mxu0 %v336
    %443 = vmatpush1.bf16.msra.mxu0 %v335
    %444 = vmatprep.subr.bf16.mxu0 %v332
    %445 = vmatpush1.bf16.msra.mxu0 %v331
    %446 = vmatprep.subr.bf16.mxu0 %v328
    %447 = vmatpush1.bf16.msra.mxu0 %v327
    %448 = vmatprep.subr.bf16.mxu0 0
    %449 = vmatpush2.bf16.msra.mxu0 0
    %450 = vmatprep.subr.bf16.mxu0 0
    %451 = vmatpush2.bf16.msra.mxu0 0
    %452 = vmatprep.subr.bf16.mxu0 0
    %453 = vmatpush2.bf16.msra.mxu0 0
    %454 = vmatprep.subr.bf16.mxu0 0
    %455 = vmatpush2.bf16.msra.mxu0 0
    %456 = vmatprep.subr.bf16.mxu0 0
    %457 = vmatpush2.bf16.msra.mxu0 0
    %458 = vmatprep.subr.bf16.mxu0 0
    %459 = vmatpush2.bf16.msra.mxu0 0
    %460 = vmatprep.subr.bf16.mxu0 0
    %461 = vmatpush2.bf16.msra.mxu0 0
    %462 = vmatprep.subr.bf16.mxu0 0
    %463 = vmatpush2.bf16.msra.mxu0 0
    %464 = vmatprep.mubr.bf16.mxu0 0
    %465 = vmatmul.mubr.bf16.gmra.mxu0 %v196
    %v466 = vpop.f32.mrf.mxu0
    %v467 = vadd.f32 0.0, %v466
    %v468 = vpop.f32.mrf.mxu0
    %v469 = vadd.f32 0.0, %v468
    %v470 = vpop.f32.mrf.mxu0
    %v471 = vadd.f32 0.0, %v470
    %v472 = vpop.f32.mrf.mxu0
    %v473 = vadd.f32 0.0, %v472
    %474 = vdwg.mxu0
    %v475 = vmax.f32 %v424, 0.0
    %v476 = vmax.f32 %v426, 0.0
    %v477 = vmax.f32 %v467, 0.0
    %v478 = vmax.f32 %v469, 0.0
    %v479 = vmax.f32 %v428, 0.0
    %v480 = vmax.f32 %v430, 0.0
    %v481 = vmax.f32 %v471, 0.0
    %v482 = vmax.f32 %v473, 0.0
    %v483 = vpack.c.bf16 %v479, %v475
    %v484 = vpack.c.bf16 %v480, %v476
    %v485 = vpack.c.bf16 %v481, %v477
    %v486 = vpack.c.bf16 %v482, %v478
    %v487 = vld [vmem:[#allocation7] sm:$0xff]
    %v488 = vld [vmem:[#allocation7 + $0x8] sm:$0xff]
    %v489 = vld [vmem:[#allocation7 + $0x10] sm:$0xff]
    %v490 = vld [vmem:[#allocation7 + $0x18] sm:$0xff]
    %v491 = vld [vmem:[#allocation7 + $0x20] sm:$0xff]
    %v492 = vld [vmem:[#allocation7 + $0x28] sm:$0xff]
    %v493 = vld [vmem:[#allocation7 + $0x30] sm:$0xff]
    %v494 = vld [vmem:[#allocation7 + $0x38] sm:$0xff]
    %v495 = vld [vmem:[#allocation7 + $0x40] sm:$0xff]
    %v496 = vld [vmem:[#allocation7 + $0x48] sm:$0xff]
    %v497 = vld [vmem:[#allocation7 + $0x50] sm:$0xff]
    %v498 = vld [vmem:[#allocation7 + $0x58] sm:$0xff]
    %v499 = vld [vmem:[#allocation7 + $0x60] sm:$0xff]
    %v500 = vld [vmem:[#allocation7 + $0x68] sm:$0xff]
    %v501 = vld [vmem:[#allocation7 + $0x70] sm:$0xff]
    %v502 = vld [vmem:[#allocation7 + $0x78] sm:$0xff]
    %v503 = vld [vmem:[#allocation7 + $0x80] sm:$0xff]
    %v504 = vld [vmem:[#allocation7 + $0x88] sm:$0xff]
    %v505 = vld [vmem:[#allocation7 + $0x90] sm:$0xff]
    %v506 = vld [vmem:[#allocation7 + $0x98] sm:$0xff]
    %v507 = vld [vmem:[#allocation7 + $0xa0] sm:$0xff]
    %v508 = vld [vmem:[#allocation7 + $0xa8] sm:$0xff]
    %v509 = vld [vmem:[#allocation7 + $0xb0] sm:$0xff]
    %v510 = vld [vmem:[#allocation7 + $0xb8] sm:$0xff]
    %v511 = vld [vmem:[#allocation7 + $0xc0] sm:$0xff]
    %v512 = vld [vmem:[#allocation7 + $0xc8] sm:$0xff]
    %v513 = vld [vmem:[#allocation7 + $0xd0] sm:$0xff]
    %v514 = vld [vmem:[#allocation7 + $0xd8] sm:$0xff]
    %v515 = vld [vmem:[#allocation7 + $0xe0] sm:$0xff]
    %v516 = vld [vmem:[#allocation7 + $0xe8] sm:$0xff]
    %v517 = vld [vmem:[#allocation7 + $0xf0] sm:$0xff]
    %v518 = vld [vmem:[#allocation7 + $0xf8] sm:$0xff]
    %v519 = vld [vmem:[#allocation7 + $0x100] sm:$0xff]
    %v520 = vld [vmem:[#allocation7 + $0x108] sm:$0xff]
    %v521 = vld [vmem:[#allocation7 + $0x110] sm:$0xff]
    %v522 = vld [vmem:[#allocation7 + $0x118] sm:$0xff]
    %v523 = vld [vmem:[#allocation7 + $0x120] sm:$0xff]
    %v524 = vld [vmem:[#allocation7 + $0x128] sm:$0xff]
    %v525 = vld [vmem:[#allocation7 + $0x130] sm:$0xff]
    %v526 = vld [vmem:[#allocation7 + $0x138] sm:$0xff]
    %v527 = vld [vmem:[#allocation7 + $0x140] sm:$0xff]
    %v528 = vld [vmem:[#allocation7 + $0x148] sm:$0xff]
    %v529 = vld [vmem:[#allocation7 + $0x150] sm:$0xff]
    %v530 = vld [vmem:[#allocation7 + $0x158] sm:$0xff]
    %v531 = vld [vmem:[#allocation7 + $0x160] sm:$0xff]
    %v532 = vld [vmem:[#allocation7 + $0x168] sm:$0xff]
    %v533 = vld [vmem:[#allocation7 + $0x170] sm:$0xff]
    %v534 = vld [vmem:[#allocation7 + $0x178] sm:$0xff]
    %v535 = vld [vmem:[#allocation7 + $0x180] sm:$0xff]
    %v536 = vld [vmem:[#allocation7 + $0x188] sm:$0xff]
    %v537 = vld [vmem:[#allocation7 + $0x190] sm:$0xff]
    %v538 = vld [vmem:[#allocation7 + $0x198] sm:$0xff]
    %v539 = vld [vmem:[#allocation7 + $0x1a0] sm:$0xff]
    %v540 = vld [vmem:[#allocation7 + $0x1a8] sm:$0xff]
    %v541 = vld [vmem:[#allocation7 + $0x1b0] sm:$0xff]
    %v542 = vld [vmem:[#allocation7 + $0x1b8] sm:$0xff]
    %v543 = vld [vmem:[#allocation7 + $0x1c0] sm:$0xff]
    %v544 = vld [vmem:[#allocation7 + $0x1c8] sm:$0xff]
    %v545 = vld [vmem:[#allocation7 + $0x1d0] sm:$0xff]
    %v546 = vld [vmem:[#allocation7 + $0x1d8] sm:$0xff]
    %v547 = vld [vmem:[#allocation7 + $0x1e0] sm:$0xff]
    %v548 = vld [vmem:[#allocation7 + $0x1e8] sm:$0xff]
    %v549 = vld [vmem:[#allocation7 + $0x1f0] sm:$0xff]
    %v550 = vld [vmem:[#allocation7 + $0x1f8] sm:$0xff]
    %v615 = vunpack.c.l.b16 %v487
    %v616 = vunpack.c.h.b16 %v487
    %v617 = vunpack.c.l.b16 %v488
    %v618 = vunpack.c.h.b16 %v488
    %v619 = vunpack.c.l.b16 %v489
    %v620 = vunpack.c.h.b16 %v489
    %v621 = vunpack.c.l.b16 %v490
    %v622 = vunpack.c.h.b16 %v490
    %v623 = vunpack.c.l.b16 %v491
    %v624 = vunpack.c.h.b16 %v491
    %v625 = vunpack.c.l.b16 %v492
    %v626 = vunpack.c.h.b16 %v492
    %v627 = vunpack.c.l.b16 %v493
    %v628 = vunpack.c.h.b16 %v493
    %v629 = vunpack.c.l.b16 %v494
    %v630 = vunpack.c.h.b16 %v494
    %v631 = vunpack.c.l.b16 %v495
    %v632 = vunpack.c.h.b16 %v495
    %v633 = vunpack.c.l.b16 %v496
    %v634 = vunpack.c.h.b16 %v496
    %v635 = vunpack.c.l.b16 %v497
    %v636 = vunpack.c.h.b16 %v497
    %v637 = vunpack.c.l.b16 %v498
    %v638 = vunpack.c.h.b16 %v498
    %v639 = vunpack.c.l.b16 %v499
    %v640 = vunpack.c.h.b16 %v499
    %v641 = vunpack.c.l.b16 %v500
    %v642 = vunpack.c.h.b16 %v500
    %v643 = vunpack.c.l.b16 %v501
    %v644 = vunpack.c.h.b16 %v501
    %v645 = vunpack.c.l.b16 %v502
    %v646 = vunpack.c.h.b16 %v502
    %v647 = vunpack.c.l.b16 %v503
    %v648 = vunpack.c.h.b16 %v503
    %v649 = vunpack.c.l.b16 %v504
    %v650 = vunpack.c.h.b16 %v504
    %v651 = vunpack.c.l.b16 %v505
    %v652 = vunpack.c.h.b16 %v505
    %v653 = vunpack.c.l.b16 %v506
    %v654 = vunpack.c.h.b16 %v506
    %v655 = vunpack.c.l.b16 %v507
    %v656 = vunpack.c.h.b16 %v507
    %v657 = vunpack.c.l.b16 %v508
    %v658 = vunpack.c.h.b16 %v508
    %v659 = vunpack.c.l.b16 %v509
    %v660 = vunpack.c.h.b16 %v509
    %v661 = vunpack.c.l.b16 %v510
    %v662 = vunpack.c.h.b16 %v510
    %v663 = vunpack.c.l.b16 %v511
    %v664 = vunpack.c.h.b16 %v511
    %v665 = vunpack.c.l.b16 %v512
    %v666 = vunpack.c.h.b16 %v512
    %v667 = vunpack.c.l.b16 %v513
    %v668 = vunpack.c.h.b16 %v513
    %v669 = vunpack.c.l.b16 %v514
    %v670 = vunpack.c.h.b16 %v514
    %v671 = vunpack.c.l.b16 %v515
    %v672 = vunpack.c.h.b16 %v515
    %v673 = vunpack.c.l.b16 %v516
    %v674 = vunpack.c.h.b16 %v516
    %v675 = vunpack.c.l.b16 %v517
    %v676 = vunpack.c.h.b16 %v517
    %v677 = vunpack.c.l.b16 %v518
    %v678 = vunpack.c.h.b16 %v518
    %v679 = vunpack.c.l.b16 %v519
    %v680 = vunpack.c.h.b16 %v519
    %v681 = vunpack.c.l.b16 %v520
    %v682 = vunpack.c.h.b16 %v520
    %v683 = vunpack.c.l.b16 %v521
    %v684 = vunpack.c.h.b16 %v521
    %v685 = vunpack.c.l.b16 %v522
    %v686 = vunpack.c.h.b16 %v522
    %v687 = vunpack.c.l.b16 %v523
    %v688 = vunpack.c.h.b16 %v523
    %v689 = vunpack.c.l.b16 %v524
    %v690 = vunpack.c.h.b16 %v524
    %v691 = vunpack.c.l.b16 %v525
    %v692 = vunpack.c.h.b16 %v525
    %v693 = vunpack.c.l.b16 %v526
    %v694 = vunpack.c.h.b16 %v526
    %v695 = vunpack.c.l.b16 %v527
    %v696 = vunpack.c.h.b16 %v527
    %v697 = vunpack.c.l.b16 %v528
    %v698 = vunpack.c.h.b16 %v528
    %v699 = vunpack.c.l.b16 %v529
    %v700 = vunpack.c.h.b16 %v529
    %v701 = vunpack.c.l.b16 %v530
    %v702 = vunpack.c.h.b16 %v530
    %v703 = vunpack.c.l.b16 %v531
    %v704 = vunpack.c.h.b16 %v531
    %v705 = vunpack.c.l.b16 %v532
    %v706 = vunpack.c.h.b16 %v532
    %v707 = vunpack.c.l.b16 %v533
    %v708 = vunpack.c.h.b16 %v533
    %v709 = vunpack.c.l.b16 %v534
    %v710 = vunpack.c.h.b16 %v534
    %v711 = vunpack.c.l.b16 %v535
    %v712 = vunpack.c.h.b16 %v535
    %v713 = vunpack.c.l.b16 %v536
    %v714 = vunpack.c.h.b16 %v536
    %v715 = vunpack.c.l.b16 %v537
    %v716 = vunpack.c.h.b16 %v537
    %v717 = vunpack.c.l.b16 %v538
    %v718 = vunpack.c.h.b16 %v538
    %v719 = vunpack.c.l.b16 %v539
    %v720 = vunpack.c.h.b16 %v539
    %v721 = vunpack.c.l.b16 %v540
    %v722 = vunpack.c.h.b16 %v540
    %v723 = vunpack.c.l.b16 %v541
    %v724 = vunpack.c.h.b16 %v541
    %v725 = vunpack.c.l.b16 %v542
    %v726 = vunpack.c.h.b16 %v542
    %v727 = vunpack.c.l.b16 %v543
    %v728 = vunpack.c.h.b16 %v543
    %v729 = vunpack.c.l.b16 %v544
    %v730 = vunpack.c.h.b16 %v544
    %v731 = vunpack.c.l.b16 %v545
    %v732 = vunpack.c.h.b16 %v545
    %v733 = vunpack.c.l.b16 %v546
    %v734 = vunpack.c.h.b16 %v546
    %v735 = vunpack.c.l.b16 %v547
    %v736 = vunpack.c.h.b16 %v547
    %v737 = vunpack.c.l.b16 %v548
    %v738 = vunpack.c.h.b16 %v548
    %v739 = vunpack.c.l.b16 %v549
    %v740 = vunpack.c.h.b16 %v549
    %v741 = vunpack.c.l.b16 %v550
    %v742 = vunpack.c.h.b16 %v550
    %v743 = vpack.c.b16 %v617, %v615
    %v744 = vpack.c.b16 %v618, %v616
    %v745 = vpack.c.b16 %v621, %v619
    %v746 = vpack.c.b16 %v622, %v620
    %v747 = vpack.c.b16 %v625, %v623
    %v748 = vpack.c.b16 %v626, %v624
    %v749 = vpack.c.b16 %v629, %v627
    %v750 = vpack.c.b16 %v630, %v628
    %v751 = vpack.c.b16 %v633, %v631
    %v752 = vpack.c.b16 %v634, %v632
    %v753 = vpack.c.b16 %v637, %v635
    %v754 = vpack.c.b16 %v638, %v636
    %v755 = vpack.c.b16 %v641, %v639
    %v756 = vpack.c.b16 %v642, %v640
    %v757 = vpack.c.b16 %v645, %v643
    %v758 = vpack.c.b16 %v646, %v644
    %v759 = vpack.c.b16 %v649, %v647
    %v760 = vpack.c.b16 %v650, %v648
    %v761 = vpack.c.b16 %v653, %v651
    %v762 = vpack.c.b16 %v654, %v652
    %v763 = vpack.c.b16 %v657, %v655
    %v764 = vpack.c.b16 %v658, %v656
    %v765 = vpack.c.b16 %v661, %v659
    %v766 = vpack.c.b16 %v662, %v660
    %v767 = vpack.c.b16 %v665, %v663
    %v768 = vpack.c.b16 %v666, %v664
    %v769 = vpack.c.b16 %v669, %v667
    %v770 = vpack.c.b16 %v670, %v668
    %v771 = vpack.c.b16 %v673, %v671
    %v772 = vpack.c.b16 %v674, %v672
    %v773 = vpack.c.b16 %v677, %v675
    %v774 = vpack.c.b16 %v678, %v676
    %v775 = vpack.c.b16 %v681, %v679
    %v776 = vpack.c.b16 %v682, %v680
    %v777 = vpack.c.b16 %v685, %v683
    %v778 = vpack.c.b16 %v686, %v684
    %v779 = vpack.c.b16 %v689, %v687
    %v780 = vpack.c.b16 %v690, %v688
    %v781 = vpack.c.b16 %v693, %v691
    %v782 = vpack.c.b16 %v694, %v692
    %v783 = vpack.c.b16 %v697, %v695
    %v784 = vpack.c.b16 %v698, %v696
    %v785 = vpack.c.b16 %v701, %v699
    %v786 = vpack.c.b16 %v702, %v700
    %v787 = vpack.c.b16 %v705, %v703
    %v788 = vpack.c.b16 %v706, %v704
    %v789 = vpack.c.b16 %v709, %v707
    %v790 = vpack.c.b16 %v710, %v708
    %v791 = vpack.c.b16 %v713, %v711
    %v792 = vpack.c.b16 %v714, %v712
    %v793 = vpack.c.b16 %v717, %v715
    %v794 = vpack.c.b16 %v718, %v716
    %v795 = vpack.c.b16 %v721, %v719
    %v796 = vpack.c.b16 %v722, %v720
    %v797 = vpack.c.b16 %v725, %v723
    %v798 = vpack.c.b16 %v726, %v724
    %v799 = vpack.c.b16 %v729, %v727
    %v800 = vpack.c.b16 %v730, %v728
    %v801 = vpack.c.b16 %v733, %v731
    %v802 = vpack.c.b16 %v734, %v732
    %v803 = vpack.c.b16 %v737, %v735
    %v804 = vpack.c.b16 %v738, %v736
    %v805 = vpack.c.b16 %v741, %v739
    %v806 = vpack.c.b16 %v742, %v740
    %871 = vmatprep.subr.bf16.mxu0 %v758
    %872 = vmatpush1.bf16.msra.mxu0 %v757
    %873 = vmatprep.subr.bf16.mxu0 %v756
    %874 = vmatpush1.bf16.msra.mxu0 %v755
    %875 = vmatprep.subr.bf16.mxu0 %v754
    %876 = vmatpush1.bf16.msra.mxu0 %v753
    %877 = vmatprep.subr.bf16.mxu0 %v752
    %878 = vmatpush1.bf16.msra.mxu0 %v751
    %879 = vmatprep.subr.bf16.mxu0 %v750
    %880 = vmatpush1.bf16.msra.mxu0 %v749
    %881 = vmatprep.subr.bf16.mxu0 %v748
    %882 = vmatpush1.bf16.msra.mxu0 %v747
    %883 = vmatprep.subr.bf16.mxu0 %v746
    %884 = vmatpush1.bf16.msra.mxu0 %v745
    %885 = vmatprep.subr.bf16.mxu0 %v744
    %886 = vmatpush1.bf16.msra.mxu0 %v743
    %887 = vmatprep.subr.bf16.mxu0 %v774
    %888 = vmatpush2.bf16.msra.mxu0 %v773
    %889 = vmatprep.subr.bf16.mxu0 %v772
    %890 = vmatpush2.bf16.msra.mxu0 %v771
    %891 = vmatprep.subr.bf16.mxu0 %v770
    %892 = vmatpush2.bf16.msra.mxu0 %v769
    %893 = vmatprep.subr.bf16.mxu0 %v768
    %894 = vmatpush2.bf16.msra.mxu0 %v767
    %895 = vmatprep.subr.bf16.mxu0 %v766
    %896 = vmatpush2.bf16.msra.mxu0 %v765
    %897 = vmatprep.subr.bf16.mxu0 %v764
    %898 = vmatpush2.bf16.msra.mxu0 %v763
    %899 = vmatprep.subr.bf16.mxu0 %v762
    %900 = vmatpush2.bf16.msra.mxu0 %v761
    %901 = vmatprep.subr.bf16.mxu0 %v760
    %902 = vmatpush2.bf16.msra.mxu0 %v759
    %903 = vmatprep.mubr.bf16.mxu0 %v484
    %904 = vmatmul.mubr.bf16.gmra.mxu0 %v483
    %v905 = vpop.f32.mrf.mxu0
    %v906 = vadd.f32 0.0, %v905
    %v907 = vpop.f32.mrf.mxu0
    %v908 = vadd.f32 0.0, %v907
    %v909 = vpop.f32.mrf.mxu0
    %v910 = vadd.f32 0.0, %v909
    %v911 = vpop.f32.mrf.mxu0
    %v912 = vadd.f32 0.0, %v911
    %913 = vdwg.mxu0
    %914 = vmatprep.subr.bf16.mxu0 %v790
    %915 = vmatpush1.bf16.msra.mxu0 %v789
    %916 = vmatprep.subr.bf16.mxu0 %v788
    %917 = vmatpush1.bf16.msra.mxu0 %v787
    %918 = vmatprep.subr.bf16.mxu0 %v786
    %919 = vmatpush1.bf16.msra.mxu0 %v785
    %920 = vmatprep.subr.bf16.mxu0 %v784
    %921 = vmatpush1.bf16.msra.mxu0 %v783
    %922 = vmatprep.subr.bf16.mxu0 %v782
    %923 = vmatpush1.bf16.msra.mxu0 %v781
    %924 = vmatprep.subr.bf16.mxu0 %v780
    %925 = vmatpush1.bf16.msra.mxu0 %v779
    %926 = vmatprep.subr.bf16.mxu0 %v778
    %927 = vmatpush1.bf16.msra.mxu0 %v777
    %928 = vmatprep.subr.bf16.mxu0 %v776
    %929 = vmatpush1.bf16.msra.mxu0 %v775
    %930 = vmatprep.subr.bf16.mxu0 %v806
    %931 = vmatpush2.bf16.msra.mxu0 %v805
    %932 = vmatprep.subr.bf16.mxu0 %v804
    %933 = vmatpush2.bf16.msra.mxu0 %v803
    %934 = vmatprep.subr.bf16.mxu0 %v802
    %935 = vmatpush2.bf16.msra.mxu0 %v801
    %936 = vmatprep.subr.bf16.mxu0 %v800
    %937 = vmatpush2.bf16.msra.mxu0 %v799
    %938 = vmatprep.subr.bf16.mxu0 %v798
    %939 = vmatpush2.bf16.msra.mxu0 %v797
    %940 = vmatprep.subr.bf16.mxu0 %v796
    %941 = vmatpush2.bf16.msra.mxu0 %v795
    %942 = vmatprep.subr.bf16.mxu0 %v794
    %943 = vmatpush2.bf16.msra.mxu0 %v793
    %944 = vmatprep.subr.bf16.mxu0 %v792
    %945 = vmatpush2.bf16.msra.mxu0 %v791
    %946 = vmatprep.mubr.bf16.mxu0 %v486
    %947 = vmatmul.mubr.bf16.gmra.mxu0 %v485
    %v948 = vpop.f32.mrf.mxu0
    %v949 = vadd.f32 %v906, %v948
    %v950 = vpop.f32.mrf.mxu0
    %v951 = vadd.f32 %v908, %v950
    %v952 = vpop.f32.mrf.mxu0
    %v953 = vadd.f32 %v910, %v952
    %v954 = vpop.f32.mrf.mxu0
    %v955 = vadd.f32 %v912, %v954
    %956 = vdwg.mxu0
    %v957 = vxor.u32 %v949, 2147483648
    %v958 = vxor.u32 %v951, 2147483648
    %v959 = vxor.u32 %v953, 2147483648
    %v960 = vxor.u32 %v955, 2147483648
    %v961 = vmul.f32 %v957, 1.442695
    %v962 = vpow.pop %v961
    %v963 = vmul.f32 %v958, 1.442695
    %v964 = vpow.pop %v963
    %v965 = vmul.f32 %v959, 1.442695
    %v966 = vpow.pop %v965
    %v967 = vmul.f32 %v960, 1.442695
    %v968 = vpow.pop %v967
    %v969 = vadd.f32 %v962, 1.0
    %v970 = vadd.f32 %v964, 1.0
    %v971 = vadd.f32 %v966, 1.0
    %v972 = vadd.f32 %v968, 1.0
    %v973 = vrcp.pop %v969
    %v974 = vmul.f32 1.0, %v973
    %v975 = vrcp.pop %v970
    %v976 = vmul.f32 1.0, %v975
    %v977 = vrcp.pop %v971
    %v978 = vmul.f32 1.0, %v977
    %v979 = vrcp.pop %v972
    %v980 = vmul.f32 1.0, %v979
    %v981 = vpack.c.bf16 %v978, %v974
    %v982 = vpack.c.bf16 %v980, %v976
    %v985 = vunpack.c.l.b16 %v981
    %v986 = vunpack.c.l.b16 %v982
    %v987 = vunpack.c.h.b16 %v981
    %v988 = vunpack.c.h.b16 %v982
    %v989 = vpack.c.b16 %v986, %v985
    %v990 = vpack.c.b16 %v988, %v987
    %993 = vst [vmem:[#allocation8] sm:$0xff] %v989
    %994 = vst [vmem:[#allocation8 + $0x8] sm:$0xff] %v990
    // Predicated region
    $region34: #{decoder_forward.1} parent=1 // pred_check
      _
    $region35: #{decoder_forward.1} parent=1 // pred_check_branch
      %996 = sbr.rel (0) target = $region37
    $region36: #{decoder_forward.1} parent=1 // pred_region
      %s998 = ssub.s32 256, 256
      %999 = vsyncadd [#allocation4], %s998
      %s1000 = sshll.u32 [#allocation8], 4
      %s1001 = int_to_ptr.vmem [resolvable:$true] %s1000
      %1006 = dma.vmem_to_hbm [thread:$0]  %s1001, 256, %s5, [#allocation4], 128, 128, 8
    $region37: #{decoder_forward.1} parent=1 // pred_fallthru
      _
    // Predicated region
    $region38: #{decoder_forward.1} parent=1 // pred_check
      _
    $region39: #{decoder_forward.1} parent=1 // pred_check_branch
      %1008 = sbr.rel (0) target = $region41
    $region40: #{decoder_forward.1} parent=1 // pred_region
      %1009 = dma.done [#allocation4], 256
    $region41: #{decoder_forward.1} parent=1 // pred_fallthru
      _
    %1010 = vsyncpa [#allocation3], 1
    %1011 = vsyncpa [#allocation6], 1
    %1012 = vsyncpa [#allocation4], 1

</llo_original>
